<compile_context>
chip_gen: v7x
topology: tpu7x:2x2x1
jax: 0.10.0
libtpu: 0.0.40
codegen_flags: <defaults>
</compile_context>

<pallas_src>
import jax
import jax.numpy as jnp
from jax.experimental import pallas as pl
from jax.experimental.pallas import tpu as pltpu

_LANE = 128
_MAX_COL_TILE = 1024                         # lanes per column tile (multiple of 128)
_PIPELINE_VMEM_BUDGET = 12 * 1024 * 1024     # 2 bufs x (in + out) tiles, < v5e 16 MiB default
_VMEM_LIMIT_BYTES = 32 * 1024 * 1024         # explicit headroom, safe on v5e/v6e/v7x
_XLA_SLICE_THRESHOLD = 256 * 1024            # below this, XLA's fused slice wins


def _chomp_copy_kernel(x_ref, o_ref):
    # Both blocks share (tm, tc) and the same (i, j) index map: straight copy.
    # Out-of-range columns (>= l_out) are masked on the output store by Pallas.
    o_ref[...] = x_ref[...]


def _round_up(a: int, b: int) -> int:
    return ((a + b - 1) // b) * b


def _choose_tiles(rows: int, l_out: int, itemsize: int) -> tuple[int, int]:
    """Pick (row_tile, col_tile) for the flattened (rows, l_out) copy."""
    sub = max(8, 32 // itemsize)  # sublane packing: f32 -> 8, bf16 -> 16, int8 -> 32

    # Column tile: multiple of 128 lanes, capped so footprint is L-independent
    # and the last-tile overread past l_out stays small.
    tc = min(_round_up(l_out, _LANE), _MAX_COL_TILE)

    # Row tile: biggest multiple of `sub` whose double-buffered in+out tiles
    # fit the pipeline budget ("biggest tile that fits" is the measured
    # optimum for mem-bound copies).
    bytes_per_tile_row = 2 * 2 * tc * itemsize  # 2 buffers each for in & out
    tm_cap = max(sub, (_PIPELINE_VMEM_BUDGET // bytes_per_tile_row) // sub * sub)
    tm = min(_round_up(rows, sub), tm_cap)

    # Megacore: never emit a 1-step grid if a split is possible — the
    # "parallel" grid axes are what get sharded across v7x's 2 TensorCores.
    if pl.cdiv(rows, tm) * pl.cdiv(l_out, tc) < 2:
        if rows > sub:
            tm = _round_up(pl.cdiv(rows, 2), sub)
        elif l_out > _LANE:
            tc = _round_up(pl.cdiv(l_out, 2), _LANE)
    return tm, tc


def chomp1d(x: jax.Array, chomp_size: int, *, force_pallas: bool = False) -> jax.Array:
    """Equivalent of Chomp1d(chomp_size)(x) for x of shape (N, C, L)."""
    n, c, l = x.shape
    assert chomp_size >= 0, "chomp_size must be non-negative"

    # PyTorch parity: x[:, :, :-k] is empty when k >= L (and when k == 0).
    l_out = l - chomp_size
    if chomp_size == 0 or l_out <= 0:
        return x[:, :, :0]

    rows = n * c
    itemsize = jnp.dtype(x.dtype).itemsize

    # Tiny shapes: kernel launch + masked sub-128-lane stores dominate; let
    # XLA's fused slice handle it.
    if not force_pallas and rows * l_out * itemsize < _XLA_SLICE_THRESHOLD:
        return x[:, :, :l_out]

    tm, tc = _choose_tiles(rows, l_out, itemsize)
    grid = (pl.cdiv(rows, tm), pl.cdiv(l_out, tc))

    x2 = x.reshape(rows, l)  # free for contiguous NCL layout

    # Bytes actually touched: reads cover at most grid[1]*tc columns (never
    # more than L); writes cover exactly l_out columns.
    read_cols = min(l, grid[1] * tc)
    bytes_accessed = rows * (read_cols + l_out) * itemsize

    out2 = pl.pallas_call(
        _chomp_copy_kernel,
        out_shape=jax.ShapeDtypeStruct((rows, l_out), x.dtype),
        grid_spec=pltpu.PrefetchScalarGridSpec(
            num_scalar_prefetch=0,
            grid=grid,
            in_specs=[pl.BlockSpec((tm, tc), lambda i, j: (i, j))],
            out_specs=pl.BlockSpec((tm, tc), lambda i, j: (i, j)),
        ),
        compiler_params=pltpu.CompilerParams(
            dimension_semantics=("parallel", "parallel"),
            vmem_limit_bytes=_VMEM_LIMIT_BYTES,
        ),
        cost_estimate=pl.CostEstimate(
            flops=0,
            transcendentals=0,
            bytes_accessed=bytes_accessed,
        ),
    )(x2)

    return out2.reshape(n, c, l_out)


if __name__ == "__main__":
    k1, k2, k3 = jax.random.split(jax.random.PRNGKey(0), 3)

    # Case 1: small TCN-like shape, non-lane-aligned L_out (masked last tile).
    N, C, L, CH = 2, 4, 16, 3
    x1 = jax.random.normal(k1, (N, C, L), dtype=jnp.float32)
    out1 = jax.block_until_ready(chomp1d(x1, CH, force_pallas=True))
    ref1 = x1[:, :, :-CH]
    assert out1.shape == (N, C, L - CH), out1.shape
    assert jnp.array_equal(out1, ref1), "mismatch with reference slice (case 1)"

    # Case 2: lane-aligned L_out; megacore split gives a (2, 1) grid.
    N2, C2, L2, CH2 = 2, 8, 300, 44
    x2 = jax.random.normal(k2, (N2, C2, L2), dtype=jnp.float32)
    out2 = jax.block_until_ready(chomp1d(x2, CH2, force_pallas=True))
    ref2 = x2[:, :, :-CH2]
    assert out2.shape == (N2, C2, L2 - CH2), out2.shape
    assert jnp.array_equal(out2, ref2), "mismatch with reference slice (case 2)"

    # Case 3: bf16 (sublane packing 16) + column split path -> (1, 2) grid.
    N3, C3, L3, CH3 = 2, 4, 260, 4
    x3 = jax.random.normal(k3, (N3, C3, L3), dtype=jnp.bfloat16)
    out3 = jax.block_until_ready(chomp1d(x3, CH3, force_pallas=True))
    ref3 = x3[:, :, :-CH3]
    assert out3.shape == (N3, C3, L3 - CH3), out3.shape
    assert jnp.array_equal(out3, ref3), "mismatch with reference slice (case 3)"

    # Case 4: tiny-shape dispatch shortcut (no Pallas launch) matches too.
    out4 = jax.block_until_ready(chomp1d(x1, CH))
    assert jnp.array_equal(out4, ref1), "mismatch with reference slice (case 4)"

    # Case 5: chomp_size >= L gives an empty tensor (PyTorch parity).
    out5 = chomp1d(x1, L)
    assert out5.shape == (N, C, 0), out5.shape

    print("KERNEL_OK")
</pallas_src>

<mosaic_0001>
module attributes {stable_mosaic.version = 11 : i64} {
  func.func @_chomp_copy_kernel(%arg0: i32, %arg1: i32, %arg2: memref<8x128xf32, #tpu.memory_space<vmem>>, %arg3: memref<8x128xf32, #tpu.memory_space<vmem>>) attributes {dimension_semantics = [#tpu.dimension_semantics<parallel>, #tpu.dimension_semantics<parallel>], iteration_bounds = array<i64: 1, 1>, scalar_prefetch = 0 : i64, scratch_operands = 0 : i64, tpu.core_type = #tpu.core_type<tc>, window_params = [{transform_indices = @transform_0, window_bounds = array<i64: 8, 128>}, {transform_indices = @transform_1, window_bounds = array<i64: 8, 128>}]} {
    %c0 = arith.constant 0 : index
    %c0_0 = arith.constant 0 : index
    %0 = vector.load %arg2[%c0, %c0_0] : memref<8x128xf32, #tpu.memory_space<vmem>>, vector<8x128xf32>
    %c0_1 = arith.constant 0 : index
    %c0_2 = arith.constant 0 : index
    %1 = vector.load %arg3[%c0_1, %c0_2] : memref<8x128xf32, #tpu.memory_space<vmem>>, vector<8x128xf32>
    tpu.vector_store %arg3[%c0_1, %c0_2], %0 {strides = array<i32>} : memref<8x128xf32, #tpu.memory_space<vmem>>, vector<8x128xf32>,
    return
  }
  func.func @transform_0(%arg0: i32, %arg1: i32) -> (i32, i32) {
    %c0_i32 = arith.constant 0 : i32
    return %arg0, %arg1 : i32, i32
  }
  func.func @transform_1(%arg0: i32, %arg1: i32) -> (i32, i32) {
    %c0_i32 = arith.constant 0 : i32
    return %arg0, %arg1 : i32, i32
  }
}

</mosaic_0001>

<llo_original>
// kernel: tpu_custom_call.1
$region0: #{tpu_custom_call.1}
  #allocation0 [shape = 'u32[]', space=smem, size = 0x4, offset = 0x4, fixed_abs, tag = 'smem constant byte address 0x4 - core index']
  #allocation1 [shape = 'u32[144,128]{1,0:T(1,128)}', space=vmem, size = 0x12000, scoped, tag = 'internal scratch']
  %s0 = inlined_call_operand.hbm [shape: f32[8,16], index: 0, kind: input, shape index: {}]
  %s1 = inlined_call_operand.hbm [shape: f32[8,13], index: 1, kind: output, shape index: {}]
  %s2 = sld [smem:[#allocation0]]
  $region18: #{tpu_custom_call.1} parent=0
    _
  %s4 = ssub.s32 1, %s2
  %s5 = scalar_select 0, %s4, %s2
  $region1: #{tpu_custom_call.1} parent=0
    #allocation2 [shape = 'u8[4096]{0}', space=vmem, size = 0x1000, scoped, tag = 'input window, operand 0, single buffered']
    #allocation3 [shape = 's32[1]{0}', space=sflag, size = 0x4, scoped, tag = 'scoped memory for tpu_custom_call.1']
    #allocation4 [shape = 's32[1]{0}', space=sflag, size = 0x4, scoped, tag = 'scoped memory for tpu_custom_call.1']
    #allocation5 [shape = 'u8[4096]{0}', space=vmem, size = 0x1000, scoped, tag = 'output window, operand 0, single buffered']
    %6 = vsyncpa [#allocation3], 0
    %7 = vsyncpa [#allocation4], 0
    // Predicated region
    $region2: #{tpu_custom_call.1} parent=1 // pred_check
      _
    $region3: #{tpu_custom_call.1} parent=1 // pred_check_branch
      %9 = sbr.rel (0) target = $region5
    $region4: #{tpu_custom_call.1} parent=1 // pred_region
      %s11 = ssub.s32 128, 128
      %12 = vsyncadd [#allocation3], %s11
      %s14 = sshll.u32 [#allocation2], 4
      %s15 = int_to_ptr.vmem [resolvable:$true] %s14
      %17 = dma.hbm_to_vmem [thread:$0]  %s0, 128, %s15, [#allocation3]
    $region5: #{tpu_custom_call.1} parent=1 // pred_fallthru
      _
    // Predicated region
    $region6: #{tpu_custom_call.1} parent=1 // pred_check
      _
    $region7: #{tpu_custom_call.1} parent=1 // pred_check_branch
      %19 = sbr.rel (0) target = $region9
    $region8: #{tpu_custom_call.1} parent=1 // pred_region
      %20 = dma.done [#allocation3], 128
    $region9: #{tpu_custom_call.1} parent=1 // pred_fallthru
      _
    %v21 = vld [vmem:[#allocation2] sm:$0xff]
    %22 = vst [vmem:[#allocation5] sm:$0xff] %v21
    // Predicated region
    $region10: #{tpu_custom_call.1} parent=1 // pred_check
      _
    $region11: #{tpu_custom_call.1} parent=1 // pred_check_branch
      %24 = sbr.rel (0) target = $region13
    $region12: #{tpu_custom_call.1} parent=1 // pred_region
      %s26 = ssub.s32 128, 128
      %27 = vsyncadd [#allocation4], %s26
      %s29 = sshll.u32 [#allocation5], 4
      %s30 = int_to_ptr.vmem [resolvable:$true] %s29
      %32 = dma.vmem_to_hbm [thread:$0]  %s30, 128, %s1, [#allocation4]
    $region13: #{tpu_custom_call.1} parent=1 // pred_fallthru
      _
    // Predicated region
    $region14: #{tpu_custom_call.1} parent=1 // pred_check
      _
    $region15: #{tpu_custom_call.1} parent=1 // pred_check_branch
      %34 = sbr.rel (0) target = $region17
    $region16: #{tpu_custom_call.1} parent=1 // pred_region
      %35 = dma.done [#allocation4], 128
    $region17: #{tpu_custom_call.1} parent=1 // pred_fallthru
      _
    %36 = vsyncpa [#allocation3], 1
    %37 = vsyncpa [#allocation4], 1

</llo_original>
